<compile_context>
chip_gen: v7x
topology: tpu7x:2x2x1
jax: 0.10.0
libtpu: 0.0.40
codegen_flags: <defaults>
</compile_context>

<pallas_src>
import jax
import jax.numpy as jnp
from jax.experimental import pallas as pl
from jax.experimental.pallas import tpu as pltpu

LANES = 128


def _round_up(x, m):
    return (x + m - 1) // m * m


def _tpu_kind():
    try:
        return jax.devices()[0].device_kind.lower()
    except Exception:
        return ""


def _num_tensorcores():
    # v7x exposes 2 addressable TensorCores per chip; v5e / v6e have 1.
    return 2 if "v7" in _tpu_kind() else 1


def _tile_rows_cap():
    kind = _tpu_kind()
    # v5e's scoped-VMEM default is smaller; keep tiles tighter there.
    if "v5 lite" in kind or "v5e" in kind or "v5lite" in kind:
        return 2048
    return 4096  # 4096 x 128 f32 = 2 MiB per input buffer


def _fpr_loss_kernel(n_ref, x_ref, t_ref, out_ref, acc_ref):
    """Per-core streaming reduction.

    acc_ref (VMEM, (3, 8, 128)) accumulates vreg-wide per-lane partials of:
      [0] sum of  t*log(x) + (1-t)*log(1-x)   (logs clamped at -100; negated in wrapper)
      [1] count of (x == 1) & (t == 0)        (false positives)
      [2] count of (t == 0)                   (negatives)
    """
    c = pl.program_id(0)          # core axis (CORE_PARALLEL on v7x, size 1 elsewhere)
    j = pl.program_id(1)          # streaming / reduction axis
    n_inner = pl.num_programs(1)  # chunks per core

    @pl.when(j == 0)
    def _():
        acc_ref[...] = jnp.zeros_like(acc_ref)

    x = x_ref[...].astype(jnp.float32)
    t = t_ref[...].astype(jnp.float32)
    tile_rows = x.shape[0]
    elems = tile_rows * LANES
    r8 = tile_rows // 8

    # Shared per-element math (fast and masked paths only differ in masking).
    log_x = jnp.maximum(jnp.log(x), -100.0)        # EUP
    log_1mx = jnp.maximum(jnp.log1p(-x), -100.0)   # EUP
    #   t*log_x + (1-t)*log_1mx == log_1mx + t*(log_x - log_1mx)   (one fewer mul)
    bce_pos = log_1mx + t * (log_x - log_1mx)
    t_zero = (t == 0.0).astype(jnp.float32)
    fp = jnp.where(x == 1.0, t_zero, 0.0)

    def accumulate(b, f, z):
        # Reduce only down to one (8, 128) vreg slab (pure VALU adds, no XLU).
        acc_ref[0, :, :] += jnp.sum(b.reshape(r8, 8, LANES), axis=0)
        acc_ref[1, :, :] += jnp.sum(f.reshape(r8, 8, LANES), axis=0)
        acc_ref[2, :, :] += jnp.sum(z.reshape(r8, 8, LANES), axis=0)

    n = n_ref[0]
    # Global element offset of this tile (int32 scalar math).
    # TODO(synk): switch the start/n scalar math to 64-bit for flattened sizes >= 2**31.
    start = (c * n_inner + j) * elems
    is_full = start <= n - elems   # whole tile in range -> no mask work at all

    @pl.when(is_full)
    def _():
        accumulate(bce_pos, fp, t_zero)

    @pl.when(jnp.logical_not(is_full))
    def _():
        # Tile straddles (or lies entirely past) n: mask with a *local* iota so
        # undefined rows of a partial edge block and duplicated (clamped
        # index_map) tiles contribute exactly zero.  jnp.where is NaN-safe.
        row_ids = jax.lax.broadcasted_iota(jnp.int32, (tile_rows, LANES), 0)
        col_ids = jax.lax.broadcasted_iota(jnp.int32, (tile_rows, LANES), 1)
        local_idx = row_ids * LANES + col_ids
        mask = local_idx < (n - start)
        accumulate(jnp.where(mask, bce_pos, 0.0),
                   jnp.where(mask, fp, 0.0),
                   jnp.where(mask, t_zero, 0.0))

    @pl.when(j == n_inner - 1)
    def _():
        out_ref[0] = acc_ref[...]


def custom_loss_with_fpr(inputs, targets, eps=1e-6):
    """Pallas TPU implementation of CustomLossWithFPR.forward (scalar output)."""
    x = jnp.ravel(inputs)
    t = jnp.ravel(targets)
    n = x.shape[0]

    n_main = (n // LANES) * LANES

    # Ragged (<128 element) tail is folded in wrapper-side — no full-array pad.
    if n_main != n:
        tx = jax.lax.slice(x, (n_main,), (n,)).astype(jnp.float32)
        tt = jax.lax.slice(t, (n_main,), (n,)).astype(jnp.float32)
        tl_log_x = jnp.maximum(jnp.log(tx), -100.0)
        tl_log_1mx = jnp.maximum(jnp.log1p(-tx), -100.0)
        tail_bce_pos = jnp.sum(tl_log_1mx + tt * (tl_log_x - tl_log_1mx))
        tail_neg = jnp.sum((tt == 0.0).astype(jnp.float32))
        tail_fp = jnp.sum(((tx == 1.0) & (tt == 0.0)).astype(jnp.float32))
    else:
        tail_bce_pos = jnp.float32(0.0)
        tail_neg = jnp.float32(0.0)
        tail_fp = jnp.float32(0.0)

    rows = n_main // LANES
    if rows == 0:
        # Everything fit in the <128-element tail; nothing for the kernel to do.
        return -tail_bce_pos / n + tail_fp / (tail_neg + eps)

    if n_main != n:
        x = jax.lax.slice(x, (0,), (n_main,))
        t = jax.lax.slice(t, (0,), (n_main,))
    x2 = x.reshape(rows, LANES)   # free bitcast of contiguous data
    t2 = t.reshape(rows, LANES)

    ncores = _num_tensorcores()
    tile_rows = min(_tile_rows_cap(), _round_up(rows, 8))
    total_chunks = pl.cdiv(rows, tile_rows)
    chunks_per_core = pl.cdiv(total_chunks, ncores)

    def in_map(c, j, n_ref):
        # Clamp so a core's out-of-range steps re-read the last real block;
        # their contribution is zeroed by the in-kernel masked path.
        blk = jnp.minimum(c * chunks_per_core + j, total_chunks - 1)
        return (blk, 0)

    if ncores > 1:
        core_sem = getattr(pltpu, "CORE_PARALLEL", "parallel")
    else:
        core_sem = "arbitrary"

    bytes_accessed = int(
        n_main * (x2.dtype.itemsize + t2.dtype.itemsize)
        + ncores * 3 * 8 * LANES * 4
    )
    cost = pl.CostEstimate(
        flops=12 * n_main,
        transcendentals=2 * n_main,
        bytes_accessed=bytes_accessed,
    )

    partials = pl.pallas_call(
        _fpr_loss_kernel,
        out_shape=jax.ShapeDtypeStruct((ncores, 3, 8, LANES), jnp.float32),
        grid_spec=pltpu.PrefetchScalarGridSpec(
            num_scalar_prefetch=1,
            grid=(ncores, chunks_per_core),
            in_specs=[
                pl.BlockSpec((tile_rows, LANES), in_map),
                pl.BlockSpec((tile_rows, LANES), in_map),
            ],
            out_specs=pl.BlockSpec((1, 3, 8, LANES), lambda c, j, n_ref: (c, 0, 0, 0)),
            scratch_shapes=[pltpu.VMEM((3, 8, LANES), jnp.float32)],
        ),
        compiler_params=pltpu.CompilerParams(
            dimension_semantics=(core_sem, "arbitrary"),
            vmem_limit_bytes=32 * 1024 * 1024,
        ),
        cost_estimate=cost,
    )(jnp.array([n_main], dtype=jnp.int32), x2, t2)

    sums = jnp.sum(partials, axis=(0, 2, 3))  # [bce_pos_sum, fp_count, neg_count]
    bce_sum_pos = sums[0] + tail_bce_pos
    fp_count = sums[1] + tail_fp
    neg_count = sums[2] + tail_neg

    bce_mean = -bce_sum_pos / n      # single negation, done once here
    fpr = fp_count / (neg_count + eps)
    return bce_mean + fpr


def _custom_loss_with_fpr_ref(inputs, targets, eps=1e-6):
    x = jnp.ravel(inputs).astype(jnp.float32)
    t = jnp.ravel(targets).astype(jnp.float32)
    log_x = jnp.maximum(jnp.log(x), -100.0)
    log_1mx = jnp.maximum(jnp.log1p(-x), -100.0)
    bce = jnp.mean(-(t * log_x + (1.0 - t) * log_1mx))
    fp = jnp.sum(((x == 1.0) & (t == 0.0)).astype(jnp.float32))
    neg = jnp.sum((t == 0.0).astype(jnp.float32))
    return bce + fp / (neg + eps)


if __name__ == "__main__":
    key = jax.random.PRNGKey(0)
    k1, k2 = jax.random.split(key)
    shape = (2, 4, 16, 16)
    # nn.BCELoss expects probabilities in [0, 1].
    inputs = jax.random.uniform(k1, shape, dtype=jnp.float32)
    # Force some exact 0/1 probabilities so the false-positive-rate term is exercised.
    inputs = inputs.at[0, 0, 0, :8].set(1.0)
    inputs = inputs.at[0, 0, 1, :8].set(0.0)
    targets = (jax.random.uniform(k2, shape) > 0.5).astype(jnp.float32)

    loss = custom_loss_with_fpr(inputs, targets)
    jax.block_until_ready(loss)

    ref = _custom_loss_with_fpr_ref(inputs, targets)
    assert jnp.allclose(loss, ref, rtol=1e-5, atol=1e-5), (loss, ref)

    print("KERNEL_OK")
</pallas_src>

<mosaic_0001>
module attributes {stable_mosaic.version = 11 : i64} {
  func.func @_fpr_loss_kernel(%arg0: i32, %arg1: i32, %arg2: memref<1xi32, #tpu.memory_space<smem>>, %arg3: memref<16x128xf32, #tpu.memory_space<vmem>>, %arg4: memref<16x128xf32, #tpu.memory_space<vmem>>, %arg5: memref<1x3x8x128xf32, #tpu.memory_space<vmem>>, %arg6: memref<3x8x128xf32, #tpu.memory_space<vmem>>) attributes {dimension_semantics = [#tpu.dimension_semantics<arbitrary>, #tpu.dimension_semantics<arbitrary>], iteration_bounds = array<i64: 1, 1>, scalar_prefetch = 1 : i64, scratch_operands = 1 : i64, tpu.core_type = #tpu.core_type<tc>, window_params = [{transform_indices = @transform_0, window_bounds = array<i64: 16, 128>}, {transform_indices = @transform_1, window_bounds = array<i64: 16, 128>}, {transform_indices = @transform_2, window_bounds = array<i64: 1, 3, 8, 128>}]} {
    %c0_i32 = arith.constant 0 : i32
    %0 = arith.cmpi eq, %arg1, %c0_i32 : i32
    %1 = arith.extui %0 : i1 to i32
    %c0_i32_0 = arith.constant 0 : i32
    %2 = arith.cmpi ne, %1, %c0_i32_0 : i32
    scf.if %2 {
      %cst_15 = arith.constant 0.000000e+00 : f32
      %38 = vector.broadcast %cst_15 : f32 to vector<3x8x128xf32>
      %c0_16 = arith.constant 0 : index
      %c0_17 = arith.constant 0 : index
      %c0_18 = arith.constant 0 : index
      %39 = vector.load %arg6[%c0_16, %c0_17, %c0_18] : memref<3x8x128xf32, #tpu.memory_space<vmem>>, vector<3x8x128xf32>
      tpu.vector_store %arg6[%c0_16, %c0_17, %c0_18], %38 {strides = array<i32>} : memref<3x8x128xf32, #tpu.memory_space<vmem>>, vector<3x8x128xf32>,
    } else {
    }
    %c0 = arith.constant 0 : index
    %c0_1 = arith.constant 0 : index
    %3 = vector.load %arg3[%c0, %c0_1] : memref<16x128xf32, #tpu.memory_space<vmem>>, vector<16x128xf32>
    %c0_2 = arith.constant 0 : index
    %c0_3 = arith.constant 0 : index
    %4 = vector.load %arg4[%c0_2, %c0_3] : memref<16x128xf32, #tpu.memory_space<vmem>>, vector<16x128xf32>
    %5 = math.log %3 : vector<16x128xf32>
    %cst = arith.constant -1.000000e+02 : f32
    %6 = vector.broadcast %cst : f32 to vector<16x128xf32>
    %7 = arith.maximumf %5, %6 : vector<16x128xf32>
    %cst_4 = arith.constant 0.000000e+00 : f32
    %8 = vector.broadcast %cst_4 : f32 to vector<16x128xf32>
    %9 = arith.subf %8, %3 : vector<16x128xf32>
    %10 = math.log1p %9 : vector<16x128xf32>
    %cst_5 = arith.constant -1.000000e+02 : f32
    %11 = vector.broadcast %cst_5 : f32 to vector<16x128xf32>
    %12 = arith.maximumf %10, %11 : vector<16x128xf32>
    %13 = arith.subf %7, %12 : vector<16x128xf32>
    %14 = arith.mulf %4, %13 : vector<16x128xf32>
    %15 = arith.addf %12, %14 : vector<16x128xf32>
    %cst_6 = arith.constant 0.000000e+00 : f32
    %16 = vector.broadcast %cst_6 : f32 to vector<16x128xf32>
    %17 = arith.cmpf oeq, %4, %16 : vector<16x128xf32>
    %18 = arith.extui %17 : vector<16x128xi1> to vector<16x128xi32>
    %19 = arith.sitofp %18 : vector<16x128xi32> to vector<16x128xf32>
    %cst_7 = arith.constant 1.000000e+00 : f32
    %20 = vector.broadcast %cst_7 : f32 to vector<16x128xf32>
    %21 = arith.cmpf oeq, %3, %20 : vector<16x128xf32>
    %cst_8 = arith.constant 0.000000e+00 : f32
    %22 = vector.broadcast %cst_8 : f32 to vector<16x128xf32>
    %23 = arith.select %21, %19, %22 : vector<16x128xi1>, vector<16x128xf32>
    %c0_9 = arith.constant 0 : index
    %24 = memref.load %arg2[%c0_9] : memref<1xi32, #tpu.memory_space<smem>>
    %c1_i32 = arith.constant 1 : i32
    %25 = arith.muli %arg0, %c1_i32 : i32
    %26 = arith.addi %25, %arg1 : i32
    %c2048_i32 = arith.constant 2048 : i32
    %27 = arith.muli %26, %c2048_i32 : i32
    %c2048_i32_10 = arith.constant 2048 : i32
    %28 = arith.subi %24, %c2048_i32_10 : i32
    %29 = arith.cmpi sle, %27, %28 : i32
    %30 = arith.extui %29 : i1 to i32
    %c0_i32_11 = arith.constant 0 : i32
    %31 = arith.cmpi ne, %30, %c0_i32_11 : i32
    scf.if %31 {
      %c0_15 = arith.constant 0 : index
      %c0_16 = arith.constant 0 : index
      %c0_17 = arith.constant 0 : index
      %38 = vector.load %arg6[%c0_15, %c0_16, %c0_17] : memref<3x8x128xf32, #tpu.memory_space<vmem>>, vector<1x8x128xf32>
      %39 = vector.shape_cast %38 : vector<1x8x128xf32> to vector<8x128xf32>
      %40 = vector.shape_cast %15 : vector<16x128xf32> to vector<2x8x128xf32>
      %cst_18 = arith.constant dense<0.000000e+00> : vector<8x128xf32>
      %41 = vector.multi_reduction <add>, %40, %cst_18 [0] : vector<2x8x128xf32> to vector<8x128xf32>
      %42 = arith.addf %39, %41 : vector<8x128xf32>
      %c0_19 = arith.constant 0 : index
      %c0_20 = arith.constant 0 : index
      %c0_21 = arith.constant 0 : index
      %43 = vector.load %arg6[%c0_19, %c0_20, %c0_21] : memref<3x8x128xf32, #tpu.memory_space<vmem>>, vector<1x8x128xf32>
      %44 = vector.shape_cast %43 : vector<1x8x128xf32> to vector<8x128xf32>
      %45 = vector.shape_cast %42 : vector<8x128xf32> to vector<1x8x128xf32>
      tpu.vector_store %arg6[%c0_19, %c0_20, %c0_21], %45 {strides = array<i32>} : memref<3x8x128xf32, #tpu.memory_space<vmem>>, vector<1x8x128xf32>,
      %c1 = arith.constant 1 : index
      %c0_22 = arith.constant 0 : index
      %c0_23 = arith.constant 0 : index
      %46 = vector.load %arg6[%c1, %c0_22, %c0_23] : memref<3x8x128xf32, #tpu.memory_space<vmem>>, vector<1x8x128xf32>
      %47 = vector.shape_cast %46 : vector<1x8x128xf32> to vector<8x128xf32>
      %48 = vector.shape_cast %23 : vector<16x128xf32> to vector<2x8x128xf32>
      %cst_24 = arith.constant dense<0.000000e+00> : vector<8x128xf32>
      %49 = vector.multi_reduction <add>, %48, %cst_24 [0] : vector<2x8x128xf32> to vector<8x128xf32>
      %50 = arith.addf %47, %49 : vector<8x128xf32>
      %c1_25 = arith.constant 1 : index
      %c0_26 = arith.constant 0 : index
      %c0_27 = arith.constant 0 : index
      %51 = vector.load %arg6[%c1_25, %c0_26, %c0_27] : memref<3x8x128xf32, #tpu.memory_space<vmem>>, vector<1x8x128xf32>
      %52 = vector.shape_cast %51 : vector<1x8x128xf32> to vector<8x128xf32>
      %53 = vector.shape_cast %50 : vector<8x128xf32> to vector<1x8x128xf32>
      tpu.vector_store %arg6[%c1_25, %c0_26, %c0_27], %53 {strides = array<i32>} : memref<3x8x128xf32, #tpu.memory_space<vmem>>, vector<1x8x128xf32>,
      %c2 = arith.constant 2 : index
      %c0_28 = arith.constant 0 : index
      %c0_29 = arith.constant 0 : index
      %54 = vector.load %arg6[%c2, %c0_28, %c0_29] : memref<3x8x128xf32, #tpu.memory_space<vmem>>, vector<1x8x128xf32>
      %55 = vector.shape_cast %54 : vector<1x8x128xf32> to vector<8x128xf32>
      %56 = vector.shape_cast %19 : vector<16x128xf32> to vector<2x8x128xf32>
      %cst_30 = arith.constant dense<0.000000e+00> : vector<8x128xf32>
      %57 = vector.multi_reduction <add>, %56, %cst_30 [0] : vector<2x8x128xf32> to vector<8x128xf32>
      %58 = arith.addf %55, %57 : vector<8x128xf32>
      %c2_31 = arith.constant 2 : index
      %c0_32 = arith.constant 0 : index
      %c0_33 = arith.constant 0 : index
      %59 = vector.load %arg6[%c2_31, %c0_32, %c0_33] : memref<3x8x128xf32, #tpu.memory_space<vmem>>, vector<1x8x128xf32>
      %60 = vector.shape_cast %59 : vector<1x8x128xf32> to vector<8x128xf32>
      %61 = vector.shape_cast %58 : vector<8x128xf32> to vector<1x8x128xf32>
      tpu.vector_store %arg6[%c2_31, %c0_32, %c0_33], %61 {strides = array<i32>} : memref<3x8x128xf32, #tpu.memory_space<vmem>>, vector<1x8x128xf32>,
    } else {
    }
    %true = arith.constant true
    %32 = arith.xori %29, %true : i1
    %33 = arith.extui %32 : i1 to i32
    %c0_i32_12 = arith.constant 0 : i32
    %34 = arith.cmpi ne, %33, %c0_i32_12 : i32
    scf.if %34 {
      %38 = tpu.iota {dimensions = array<i32: 0>} : vector<16x128xi32>
      %39 = tpu.iota {dimensions = array<i32: 1>} : vector<16x128xi32>
      %c128_i32 = arith.constant 128 : i32
      %40 = vector.broadcast %c128_i32 : i32 to vector<16x128xi32>
      %41 = arith.muli %38, %40 : vector<16x128xi32>
      %42 = arith.addi %41, %39 : vector<16x128xi32>
      %43 = arith.subi %24, %27 : i32
      %44 = vector.broadcast %43 : i32 to vector<16x128xi32>
      %45 = arith.cmpi slt, %42, %44 : vector<16x128xi32>
      %cst_15 = arith.constant 0.000000e+00 : f32
      %46 = vector.broadcast %cst_15 : f32 to vector<16x128xf32>
      %47 = arith.select %45, %15, %46 : vector<16x128xi1>, vector<16x128xf32>
      %cst_16 = arith.constant 0.000000e+00 : f32
      %48 = vector.broadcast %cst_16 : f32 to vector<16x128xf32>
      %49 = arith.select %45, %23, %48 : vector<16x128xi1>, vector<16x128xf32>
      %cst_17 = arith.constant 0.000000e+00 : f32
      %50 = vector.broadcast %cst_17 : f32 to vector<16x128xf32>
      %51 = arith.select %45, %19, %50 : vector<16x128xi1>, vector<16x128xf32>
      %c0_18 = arith.constant 0 : index
      %c0_19 = arith.constant 0 : index
      %c0_20 = arith.constant 0 : index
      %52 = vector.load %arg6[%c0_18, %c0_19, %c0_20] : memref<3x8x128xf32, #tpu.memory_space<vmem>>, vector<1x8x128xf32>
      %53 = vector.shape_cast %52 : vector<1x8x128xf32> to vector<8x128xf32>
      %54 = vector.shape_cast %47 : vector<16x128xf32> to vector<2x8x128xf32>
      %cst_21 = arith.constant dense<0.000000e+00> : vector<8x128xf32>
      %55 = vector.multi_reduction <add>, %54, %cst_21 [0] : vector<2x8x128xf32> to vector<8x128xf32>
      %56 = arith.addf %53, %55 : vector<8x128xf32>
      %c0_22 = arith.constant 0 : index
      %c0_23 = arith.constant 0 : index
      %c0_24 = arith.constant 0 : index
      %57 = vector.load %arg6[%c0_22, %c0_23, %c0_24] : memref<3x8x128xf32, #tpu.memory_space<vmem>>, vector<1x8x128xf32>
      %58 = vector.shape_cast %57 : vector<1x8x128xf32> to vector<8x128xf32>
      %59 = vector.shape_cast %56 : vector<8x128xf32> to vector<1x8x128xf32>
      tpu.vector_store %arg6[%c0_22, %c0_23, %c0_24], %59 {strides = array<i32>} : memref<3x8x128xf32, #tpu.memory_space<vmem>>, vector<1x8x128xf32>,
      %c1 = arith.constant 1 : index
      %c0_25 = arith.constant 0 : index
      %c0_26 = arith.constant 0 : index
      %60 = vector.load %arg6[%c1, %c0_25, %c0_26] : memref<3x8x128xf32, #tpu.memory_space<vmem>>, vector<1x8x128xf32>
      %61 = vector.shape_cast %60 : vector<1x8x128xf32> to vector<8x128xf32>
      %62 = vector.shape_cast %49 : vector<16x128xf32> to vector<2x8x128xf32>
      %cst_27 = arith.constant dense<0.000000e+00> : vector<8x128xf32>
      %63 = vector.multi_reduction <add>, %62, %cst_27 [0] : vector<2x8x128xf32> to vector<8x128xf32>
      %64 = arith.addf %61, %63 : vector<8x128xf32>
      %c1_28 = arith.constant 1 : index
      %c0_29 = arith.constant 0 : index
      %c0_30 = arith.constant 0 : index
      %65 = vector.load %arg6[%c1_28, %c0_29, %c0_30] : memref<3x8x128xf32, #tpu.memory_space<vmem>>, vector<1x8x128xf32>
      %66 = vector.shape_cast %65 : vector<1x8x128xf32> to vector<8x128xf32>
      %67 = vector.shape_cast %64 : vector<8x128xf32> to vector<1x8x128xf32>
      tpu.vector_store %arg6[%c1_28, %c0_29, %c0_30], %67 {strides = array<i32>} : memref<3x8x128xf32, #tpu.memory_space<vmem>>, vector<1x8x128xf32>,
      %c2 = arith.constant 2 : index
      %c0_31 = arith.constant 0 : index
      %c0_32 = arith.constant 0 : index
      %68 = vector.load %arg6[%c2, %c0_31, %c0_32] : memref<3x8x128xf32, #tpu.memory_space<vmem>>, vector<1x8x128xf32>
      %69 = vector.shape_cast %68 : vector<1x8x128xf32> to vector<8x128xf32>
      %70 = vector.shape_cast %51 : vector<16x128xf32> to vector<2x8x128xf32>
      %cst_33 = arith.constant dense<0.000000e+00> : vector<8x128xf32>
      %71 = vector.multi_reduction <add>, %70, %cst_33 [0] : vector<2x8x128xf32> to vector<8x128xf32>
      %72 = arith.addf %69, %71 : vector<8x128xf32>
      %c2_34 = arith.constant 2 : index
      %c0_35 = arith.constant 0 : index
      %c0_36 = arith.constant 0 : index
      %73 = vector.load %arg6[%c2_34, %c0_35, %c0_36] : memref<3x8x128xf32, #tpu.memory_space<vmem>>, vector<1x8x128xf32>
      %74 = vector.shape_cast %73 : vector<1x8x128xf32> to vector<8x128xf32>
      %75 = vector.shape_cast %72 : vector<8x128xf32> to vector<1x8x128xf32>
      tpu.vector_store %arg6[%c2_34, %c0_35, %c0_36], %75 {strides = array<i32>} : memref<3x8x128xf32, #tpu.memory_space<vmem>>, vector<1x8x128xf32>,
    } else {
    }
    %c0_i32_13 = arith.constant 0 : i32
    %35 = arith.cmpi eq, %arg1, %c0_i32_13 : i32
    %36 = arith.extui %35 : i1 to i32
    %c0_i32_14 = arith.constant 0 : i32
    %37 = arith.cmpi ne, %36, %c0_i32_14 : i32
    scf.if %37 {
      %c0_15 = arith.constant 0 : index
      %c0_16 = arith.constant 0 : index
      %c0_17 = arith.constant 0 : index
      %38 = vector.load %arg6[%c0_15, %c0_16, %c0_17] : memref<3x8x128xf32, #tpu.memory_space<vmem>>, vector<3x8x128xf32>
      %c0_18 = arith.constant 0 : index
      %c0_19 = arith.constant 0 : index
      %c0_20 = arith.constant 0 : index
      %c0_21 = arith.constant 0 : index
      %39 = vector.load %arg5[%c0_18, %c0_19, %c0_20, %c0_21] : memref<1x3x8x128xf32, #tpu.memory_space<vmem>>, vector<1x3x8x128xf32>
      %40 = vector.shape_cast %39 : vector<1x3x8x128xf32> to vector<3x8x128xf32>
      %41 = vector.shape_cast %38 : vector<3x8x128xf32> to vector<1x3x8x128xf32>
      tpu.vector_store %arg5[%c0_18, %c0_19, %c0_20, %c0_21], %41 {strides = array<i32>} : memref<1x3x8x128xf32, #tpu.memory_space<vmem>>, vector<1x3x8x128xf32>,
    } else {
    }
    return
  }
  func.func @transform_0(%arg0: i32, %arg1: i32, %arg2: memref<1xi32, #tpu.memory_space<smem>>) -> (i32, i32) {
    %c1_i32 = arith.constant 1 : i32
    %0 = arith.muli %arg0, %c1_i32 : i32
    %1 = arith.addi %0, %arg1 : i32
    %c0_i32 = arith.constant 0 : i32
    %2 = arith.minsi %1, %c0_i32 : i32
    %c0_i32_0 = arith.constant 0 : i32
    %c0_i32_1 = arith.constant 0 : i32
    return %2, %c0_i32_0 : i32, i32
  }
  func.func @transform_1(%arg0: i32, %arg1: i32, %arg2: memref<1xi32, #tpu.memory_space<smem>>) -> (i32, i32) {
    %c1_i32 = arith.constant 1 : i32
    %0 = arith.muli %arg0, %c1_i32 : i32
    %1 = arith.addi %0, %arg1 : i32
    %c0_i32 = arith.constant 0 : i32
    %2 = arith.minsi %1, %c0_i32 : i32
    %c0_i32_0 = arith.constant 0 : i32
    %c0_i32_1 = arith.constant 0 : i32
    return %2, %c0_i32_0 : i32, i32
  }
  func.func @transform_2(%arg0: i32, %arg1: i32, %arg2: memref<1xi32, #tpu.memory_space<smem>>) -> (i32, i32, i32, i32) {
    %c0_i32 = arith.constant 0 : i32
    %c0_i32_0 = arith.constant 0 : i32
    %c0_i32_1 = arith.constant 0 : i32
    %c0_i32_2 = arith.constant 0 : i32
    return %arg0, %c0_i32, %c0_i32_0, %c0_i32_1 : i32, i32, i32, i32
  }
}

</mosaic_0001>

<llo_original>
// kernel: tpu_custom_call.1
$region0: #{tpu_custom_call.1}
  #allocation0 [shape = 'u32[]', space=smem, size = 0x4, offset = 0x4, fixed_abs, tag = 'smem constant byte address 0x4 - core index']
  #allocation1 [shape = 'u32[144,128]{1,0:T(1,128)}', space=vmem, size = 0x12000, scoped, tag = 'internal scratch']
  #allocation2 [shape = 'f32[3,8,128]{2,1,0:T(8,128)}', space=vmem, size = 0x3000, scoped, tag = 'scratch operand']
  #allocation3 [shape = 's32[1]{0}', space=sflag, size = 0x4, scoped, tag = 'scoped memory for tpu_custom_call.1']
  #allocation4 [shape = 's32[1]{0:T(128)S(6)}', space=smem, size = 0x200, scoped, tag = 'prefetched SMEM operand 0']
  %s0 = inlined_call_operand.<no memory space> [shape: s32[1], index: 0, kind: input, shape index: {}]
  %s1 = inlined_call_operand.hbm [shape: f32[16,128], index: 1, kind: input, shape index: {}]
  %s2 = inlined_call_operand.hbm [shape: f32[16,128], index: 2, kind: input, shape index: {}]
  %s3 = inlined_call_operand.hbm [shape: f32[1,3,8,128], index: 3, kind: output, shape index: {}]
  %s4 = sld [smem:[#allocation0]]
  $region42: #{tpu_custom_call.1} parent=0
    _
  %s6 = ssub.s32 1, %s4
  %s7 = scalar_select 0, %s6, %s4
  %8 = sst [smem:[#allocation4]] %s0
  $region1: #{tpu_custom_call.1} parent=0
    #allocation5 [shape = 'u8[8192]{0}', space=vmem, size = 0x2000, scoped, tag = 'input window, operand 1, single buffered']
    #allocation6 [shape = 's32[1]{0}', space=sflag, size = 0x4, scoped, tag = 'scoped memory for tpu_custom_call.1']
    #allocation7 [shape = 's32[1]{0}', space=sflag, size = 0x4, scoped, tag = 'scoped memory for tpu_custom_call.1']
    #allocation8 [shape = 'u8[8192]{0}', space=vmem, size = 0x2000, scoped, tag = 'input window, operand 2, single buffered']
    #allocation9 [shape = 's32[1]{0}', space=sflag, size = 0x4, scoped, tag = 'scoped memory for tpu_custom_call.1']
    #allocation10 [shape = 'u8[12288]{0}', space=vmem, size = 0x3000, scoped, tag = 'output window, operand 0, single buffered']
    %9 = vsyncpa [#allocation6], 0
    %10 = vsyncpa [#allocation9], 0
    %11 = vsyncpa [#allocation7], 0
    // Predicated region
    $region2: #{tpu_custom_call.1} parent=1 // pred_check
      _
    $region3: #{tpu_custom_call.1} parent=1 // pred_check_branch
      %13 = sbr.rel (0) target = $region5
    $region4: #{tpu_custom_call.1} parent=1 // pred_region
      %s14 = sadd.s32 0, 0
      %p15 = scmp.lt.s32.totalorder %s14, 0
      %s16 = scalar_select %p15, %s14, 0
      %s17 = smul.u32 2, %s16
      %s19 = ssub.s32 256, 256
      %20 = vsyncadd [#allocation6], %s19
      %s21 = smul.addr %s17, 128
      %s22 = scalar_lea.hbm %s1, %s21
      %s23 = sshll.u32 [#allocation5], 4
      %s24 = int_to_ptr.vmem [resolvable:$true] %s23
      %29 = dma.hbm_to_vmem [thread:$0]  %s22, 256, %s24, [#allocation6], 128, 128, 8
    $region5: #{tpu_custom_call.1} parent=1 // pred_fallthru
      _
    // Predicated region
    $region6: #{tpu_custom_call.1} parent=1 // pred_check
      _
    $region7: #{tpu_custom_call.1} parent=1 // pred_check_branch
      %31 = sbr.rel (0) target = $region9
    $region8: #{tpu_custom_call.1} parent=1 // pred_region
      %s32 = sadd.s32 0, 0
      %p33 = scmp.lt.s32.totalorder %s32, 0
      %s34 = scalar_select %p33, %s32, 0
      %s35 = smul.u32 2, %s34
      %s37 = ssub.s32 256, 256
      %38 = vsyncadd [#allocation9], %s37
      %s39 = smul.addr %s35, 128
      %s40 = scalar_lea.hbm %s2, %s39
      %s41 = sshll.u32 [#allocation8], 4
      %s42 = int_to_ptr.vmem [resolvable:$true] %s41
      %47 = dma.hbm_to_vmem [thread:$0]  %s40, 256, %s42, [#allocation9], 128, 128, 8
    $region9: #{tpu_custom_call.1} parent=1 // pred_fallthru
      _
    // Predicated region
    $region10: #{tpu_custom_call.1} parent=1 // pred_check
      _
    $region11: #{tpu_custom_call.1} parent=1 // pred_check_branch
      %49 = sbr.rel (0) target = $region13
    $region12: #{tpu_custom_call.1} parent=1 // pred_region
      %50 = dma.done [#allocation6], 256
    $region13: #{tpu_custom_call.1} parent=1 // pred_fallthru
      _
    // Predicated region
    $region14: #{tpu_custom_call.1} parent=1 // pred_check
      _
    $region15: #{tpu_custom_call.1} parent=1 // pred_check_branch
      %52 = sbr.rel (0) target = $region17
    $region16: #{tpu_custom_call.1} parent=1 // pred_region
      %53 = dma.done [#allocation9], 256
    $region17: #{tpu_custom_call.1} parent=1 // pred_fallthru
      _
    %s54 = sadd.s32 0, 0
    %p55 = scmp.lt.s32.totalorder %s54, 0
    %s56 = scalar_select %p55, %s54, 0
    %s57 = smul.u32 2, %s56
    %s58 = sadd.s32 0, 0
    %p59 = scmp.lt.s32.totalorder %s58, 0
    %s60 = scalar_select %p59, %s58, 0
    %s61 = smul.u32 2, %s60
    %p62 = scmp.eq.s32.totalorder 0, 0
    // Predicated region
    $region18: #{tpu_custom_call.1} parent=1 // pred_check
      %p63 = pneg %p62
    $region19: #{tpu_custom_call.1} parent=1 // pred_check_branch
      %65 = sbr.rel (%p63) target = $region21
    $region20: #{tpu_custom_call.1} parent=1 // pred_region
      %66 = vst [vmem:[#allocation2] sm:$0xff] 0.0
      %67 = vst [vmem:[#allocation2 + $0x8] sm:$0xff] 0.0
      %68 = vst [vmem:[#allocation2 + $0x10] sm:$0xff] 0.0
    $region21: #{tpu_custom_call.1} parent=1 // pred_fallthru
      _
    %v69 = vld [vmem:[#allocation5] sm:$0xff]
    %v70 = vld [vmem:[#allocation5 + $0x8] sm:$0xff]
    %v71 = vld [vmem:[#allocation8] sm:$0xff]
    %v72 = vld [vmem:[#allocation8 + $0x8] sm:$0xff]
    %v73 = vlog2.pop %v69
    %v74 = vmul.f32 %v73, 0.6931472
    %v75 = vlog2.pop %v70
    %v76 = vmul.f32 %v75, 0.6931472
    %v77 = vmax.f32 %v74, -100.0
    %v78 = vmax.f32 %v76, -100.0
    %v79 = vsub.f32 0.0, %v69
    %v80 = vsub.f32 0.0, %v70
    %v81 = vadd.f32 %v79, 1.0
    %v82 = vlog2.pop %v81
    %v83 = vmul.f32 %v82, 0.6931472
    %v84 = vmul.f32 -0.5, %v79
    %v85 = vadd.f32 %v84, 1.0
    %v86 = vmul.f32 %v85, %v79
    %v87 = vand.u32 2147483647, %v79
    %vm88 = vcmp.lt.f32.partialorder %v87, 0.0004427343
    %v89 = vsel %vm88, %v86, %v83
    %v90 = vadd.f32 %v80, 1.0
    %v91 = vlog2.pop %v90
    %v92 = vmul.f32 %v91, 0.6931472
    %v93 = vmul.f32 -0.5, %v80
    %v94 = vadd.f32 %v93, 1.0
    %v95 = vmul.f32 %v94, %v80
    %v96 = vand.u32 2147483647, %v80
    %vm97 = vcmp.lt.f32.partialorder %v96, 0.0004427343
    %v98 = vsel %vm97, %v95, %v92
    %v99 = vmax.f32 %v89, -100.0
    %v100 = vmax.f32 %v98, -100.0
    %v101 = vsub.f32 %v77, %v99
    %v102 = vsub.f32 %v78, %v100
    %v103 = vmul.f32 %v71, %v101
    %v104 = vmul.f32 %v72, %v102
    %v105 = vadd.f32 %v99, %v103
    %v106 = vadd.f32 %v100, %v104
    %vm107 = vcmp.eq.f32.partialorder %v71, 0.0
    %vm108 = vcmp.eq.f32.partialorder %v72, 0.0
    %v109 = vsel %vm107, 1, 0
    %v110 = vsel %vm108, 1, 0
    %v111 = vcvt.s32.f32 %v109
    %v112 = vcvt.s32.f32 %v110
    %vm113 = vcmp.eq.f32.partialorder %v69, 1.0
    %vm114 = vcmp.eq.f32.partialorder %v70, 1.0
    %v115 = vsel %vm113, %v111, 0.0
    %v116 = vsel %vm114, %v112, 0.0
    %s117 = sld [smem:[#allocation4]]
    %s118 = sadd.s32 0, 0
    %s119 = smul.u32 %s118, 2048
    %s120 = ssub.s32 %s117, 2048
    %p121 = scmp.le.s32.totalorder %s119, %s120
    // Predicated region
    $region22: #{tpu_custom_call.1} parent=1 // pred_check
      %p122 = pneg %p121
    $region23: #{tpu_custom_call.1} parent=1 // pred_check_branch
      %124 = sbr.rel (%p122) target = $region25
    $region24: #{tpu_custom_call.1} parent=1 // pred_region
      %v125 = vld [vmem:[#allocation2] sm:$0xff]
      %v126 = vadd.f32 %v105, %v106
      %v127 = vadd.f32 %v125, %v126
      %128 = vst [vmem:[#allocation2] sm:$0xff] %v127
      %s129 = scalar_lea.vmem [#allocation2], 8
      %v130 = vld [vmem:[%s129] sm:$0xff]
      %v131 = vadd.f32 %v115, %v116
      %v132 = vadd.f32 %v130, %v131
      %133 = vst [vmem:[%s129] sm:$0xff] %v132
      %s134 = scalar_lea.vmem [#allocation2], 16
      %v135 = vld [vmem:[%s134] sm:$0xff]
      %v136 = vadd.f32 %v111, %v112
      %v137 = vadd.f32 %v135, %v136
      %138 = vst [vmem:[%s134] sm:$0xff] %v137
    $region25: #{tpu_custom_call.1} parent=1 // pred_fallthru
      _
    %p139 = scmp.gt.s32.totalorder %s119, %s120
    // Predicated region
    $region26: #{tpu_custom_call.1} parent=1 // pred_check
      %p140 = pneg %p139
    $region27: #{tpu_custom_call.1} parent=1 // pred_check_branch
      %142 = sbr.rel (%p140) target = $region29
    $region28: #{tpu_custom_call.1} parent=1 // pred_region
      %v143 = vlaneseq
      %v144 = vshrl.u32 %v143, 7
      %v145 = vadd.s32 %v144, 8
      %v146 = vlaneseq
      %v147 = vand.u32 %v146, 127
      %v148 = vmul.u32 %v144, 128
      %v149 = vmul.u32 %v145, 128
      %v150 = vadd.s32 %v148, %v147
      %v151 = vadd.s32 %v149, %v147
      %s152 = ssub.s32 %s117, %s119
      %v153 = vstv %s152
      %vm154 = vcmp.lt.s32.totalorder %v150, %v153
      %vm155 = vcmp.lt.s32.totalorder %v151, %v153
      %v156 = vsel %vm154, %v105, 0.0
      %v157 = vsel %vm155, %v106, 0.0
      %v158 = vsel %vm154, %v115, 0.0
      %v159 = vsel %vm155, %v116, 0.0
      %v160 = vsel %vm154, %v111, 0.0
      %v161 = vsel %vm155, %v112, 0.0
      %v162 = vld [vmem:[#allocation2] sm:$0xff]
      %v163 = vadd.f32 %v156, %v157
      %v164 = vadd.f32 %v162, %v163
      %165 = vst [vmem:[#allocation2] sm:$0xff] %v164
      %s166 = scalar_lea.vmem [#allocation2], 8
      %v167 = vld [vmem:[%s166] sm:$0xff]
      %v168 = vadd.f32 %v158, %v159
      %v169 = vadd.f32 %v167, %v168
      %170 = vst [vmem:[%s166] sm:$0xff] %v169
      %s171 = scalar_lea.vmem [#allocation2], 16
      %v172 = vld [vmem:[%s171] sm:$0xff]
      %v173 = vadd.f32 %v160, %v161
      %v174 = vadd.f32 %v172, %v173
      %175 = vst [vmem:[%s171] sm:$0xff] %v174
    $region29: #{tpu_custom_call.1} parent=1 // pred_fallthru
      _
    // Predicated region
    $region30: #{tpu_custom_call.1} parent=1 // pred_check
      %p176 = pneg %p62
    $region31: #{tpu_custom_call.1} parent=1 // pred_check_branch
      %178 = sbr.rel (%p176) target = $region33
    $region32: #{tpu_custom_call.1} parent=1 // pred_region
      %v179 = vld [vmem:[#allocation2] sm:$0xff]
      %v180 = vld [vmem:[#allocation2 + $0x8] sm:$0xff]
      %v181 = vld [vmem:[#allocation2 + $0x10] sm:$0xff]
      %182 = vst [vmem:[#allocation10] sm:$0xff] %v179
      %183 = vst [vmem:[#allocation10 + $0x8] sm:$0xff] %v180
      %184 = vst [vmem:[#allocation10 + $0x10] sm:$0xff] %v181
    $region33: #{tpu_custom_call.1} parent=1 // pred_fallthru
      _
    // Predicated region
    $region34: #{tpu_custom_call.1} parent=1 // pred_check
      _
    $region35: #{tpu_custom_call.1} parent=1 // pred_check_branch
      %186 = sbr.rel (0) target = $region37
    $region36: #{tpu_custom_call.1} parent=1 // pred_region
      %s188 = ssub.s32 384, 384
      %189 = vsyncadd [#allocation7], %s188
      %s190 = sshll.u32 [#allocation10], 4
      %s191 = int_to_ptr.vmem [resolvable:$true] %s190
      %196 = dma.vmem_to_hbm [thread:$0]  %s191, 384, %s3, [#allocation7], 128, 128, 8
    $region37: #{tpu_custom_call.1} parent=1 // pred_fallthru
      _
    // Predicated region
    $region38: #{tpu_custom_call.1} parent=1 // pred_check
      _
    $region39: #{tpu_custom_call.1} parent=1 // pred_check_branch
      %198 = sbr.rel (0) target = $region41
    $region40: #{tpu_custom_call.1} parent=1 // pred_region
      %199 = dma.done [#allocation7], 384
    $region41: #{tpu_custom_call.1} parent=1 // pred_fallthru
      _
    %200 = vsyncpa [#allocation6], 1
    %201 = vsyncpa [#allocation9], 1
    %202 = vsyncpa [#allocation7], 1

</llo_original>
